<compile_context>
chip_gen: v7x
topology: tpu7x:2x2x1
jax: 0.10.0
libtpu: 0.0.40
codegen_flags: <defaults>
</compile_context>

<pallas_src>
import functools

import jax
import jax.numpy as jnp
from jax.experimental import pallas as pl
from jax.experimental.pallas import tpu as pltpu

D_MODEL = 32
D_HIDDEN = 64
LN_EPS = 1e-5
PACK = 4                    # original rows packed along the 128-lane dimension
D_PACK = PACK * D_MODEL     # 128
H_PACK = PACK * D_HIDDEN    # 256


def fc_output_kernel(x_ref, avg_ref, w1_ref, b1_ref, w2_ref, b2_ref, o_ref):
    # x_ref: [tm, 128] = 4 original rows (32 features each) packed per lane row.
    x = x_ref[...].astype(jnp.float32)

    # Per-32-lane-segment LayerNorm statistics in one pass (f32): mean and E[x^2]
    # via a block-diagonal averaging matmul.  Result is already broadcast across
    # each 32-lane segment -> no XLU reductions / lane broadcasts needed.  Once
    # the kernel is HBM-bound (bf16 W1/W2 path) these are free MXU filler.
    avg = avg_ref[...]
    mean_b = jnp.dot(x, avg, preferred_element_type=jnp.float32)
    ex2_b = jnp.dot(x * x, avg, preferred_element_type=jnp.float32)
    var_b = ex2_b - mean_b * mean_b
    xn = (x - mean_b) * jax.lax.rsqrt(var_b + LN_EPS)
    # (LayerNorm affine gamma/beta is folded into w1/b1 on the host.)

    # Linear(32->64) x4 block-diagonal + ReLU: [tm,128] @ [128,256] (bf16 MXU, f32 acc)
    mm_dtype = w1_ref.dtype
    h = jnp.dot(xn.astype(mm_dtype), w1_ref[...],
                preferred_element_type=jnp.float32) + b1_ref[...]
    h = jnp.maximum(h, 0.0)

    # Linear(64->32) x4 block-diagonal: [tm,256] @ [256,128]
    out = jnp.dot(h.astype(mm_dtype), w2_ref[...],
                  preferred_element_type=jnp.float32) + b2_ref[...]

    # Dropout(p=0.1) is identity in eval/inference mode.
    # TODO(synk): training-mode dropout (pltpu.prng_random_bits mask) not emitted.

    # Residual add against the original (pre-LN) activations; lane-dense store.
    o_ref[...] = (x + out).astype(o_ref.dtype)


def pack_params(gamma, beta, w1, b1, w2, b2, *, matmul_dtype=jnp.bfloat16):
    """One-time parameter prep.  Call once and reuse the result across calls.

    Folds the LayerNorm affine into the first linear layer:
      (xn*gamma + beta) @ w1 + b1 == xn @ (gamma[:,None]*w1) + (beta @ w1 + b1)
    and builds 4-way block-diagonal (kron) weights so 4 packed rows share one
    lane-dense 128/256-wide contraction.
    """
    f32 = jnp.float32
    w1_eff = gamma.astype(f32)[:, None] * w1.astype(f32)
    b1_eff = beta.astype(f32) @ w1.astype(f32) + b1.astype(f32)

    eye_p = jnp.eye(PACK, dtype=f32)
    w1p = jnp.kron(eye_p, w1_eff).astype(matmul_dtype)           # (128, 256)
    w2p = jnp.kron(eye_p, w2.astype(f32)).astype(matmul_dtype)   # (256, 128)
    b1p = jnp.tile(b1_eff, PACK).reshape(1, H_PACK)              # (1, 256) f32
    b2p = jnp.tile(b2.astype(f32), PACK).reshape(1, D_PACK)      # (1, 128) f32
    # Block-diagonal averaging matrix: per-32-lane-segment mean, broadcast back.
    avg = jnp.kron(eye_p, jnp.full((D_MODEL, D_MODEL), 1.0 / D_MODEL, f32))  # (128,128)
    return avg, w1p, b1p, w2p, b2p


def fully_connected_output_packed(x, packed, *, tm=2048,
                                  vmem_limit_bytes=48 * 1024 * 1024):
    """x: [B, S, 32] -> [B, S, 32], using pre-packed params from pack_params().

    tm = packed rows (each = 4 original rows) per grid step.  tm=2048 keeps the
    per-step DMA well above the ~0.35 us per-step pipeline overhead on v7x while
    the in/out double-buffers + the [tm,256] f32 temp stay far under 48 MiB.
    """
    avg, w1p, b1p, w2p, b2p = packed
    B, S, D = x.shape
    assert D == D_MODEL
    N = B * S

    # Pad only to a multiple of 32 original rows (8 packed rows).  Zero rows are
    # LN-safe (finite) and the reshape [N,32]->[N/4,128] stays a free relayout.
    n_pad = -(-N // (8 * PACK)) * (8 * PACK)
    x2 = x.reshape(N, D_MODEL)
    if n_pad != N:
        x2 = jnp.pad(x2, ((0, n_pad - N), (0, 0)))
    rows = n_pad // PACK                              # packed rows, multiple of 8
    xp = x2.reshape(rows, D_PACK)                     # [rows, 128], lane-dense

    # Sublane-aligned tile; ragged last grid block is handled by Pallas (partial
    # reads produce garbage lanes that never reach HBM: output writeback is
    # bounds-masked, and no cross-row mixing happens in the kernel).
    tm_eff = max(8, min((tm // 8) * 8, rows))
    # Keep both v7x TensorCores busy: >=2 grid steps whenever there's enough work.
    if rows >= 16 and rows <= tm_eff:
        tm_eff = max(8, ((-(-rows // 2) + 7) // 8) * 8)
    grid = (-(-rows // tm_eff),)

    w_itemsize = jnp.dtype(w1p.dtype).itemsize
    flops_per_row = 2 * (2 * D_PACK * D_PACK + D_PACK * H_PACK + H_PACK * D_PACK)
    cost = pl.CostEstimate(
        flops=int(rows * flops_per_row),
        transcendentals=int(rows * D_PACK),
        bytes_accessed=int(2 * rows * D_PACK * x.dtype.itemsize
                           + 4 * (avg.size + b1p.size + b2p.size)
                           + w_itemsize * (w1p.size + w2p.size)),
    )

    outp = pl.pallas_call(
        fc_output_kernel,
        out_shape=jax.ShapeDtypeStruct((rows, D_PACK), x.dtype),
        grid_spec=pltpu.PrefetchScalarGridSpec(
            num_scalar_prefetch=0,
            grid=grid,
            in_specs=[
                pl.BlockSpec((tm_eff, D_PACK), lambda i: (i, 0)),   # packed x rows
                # Constant operands (grid-invariant index maps, ~0.2 MiB total in
                # bf16): fetched once / kept resident by the pipeline.
                pl.BlockSpec((D_PACK, D_PACK), lambda i: (0, 0)),   # averaging matrix
                pl.BlockSpec((D_PACK, H_PACK), lambda i: (0, 0)),   # W1' (block-diag)
                pl.BlockSpec((1, H_PACK), lambda i: (0, 0)),        # b1'
                pl.BlockSpec((H_PACK, D_PACK), lambda i: (0, 0)),   # W2' (block-diag)
                pl.BlockSpec((1, D_PACK), lambda i: (0, 0)),        # b2'
            ],
            out_specs=pl.BlockSpec((tm_eff, D_PACK), lambda i: (i, 0)),
        ),
        compiler_params=pltpu.CompilerParams(
            dimension_semantics=("parallel",),
            vmem_limit_bytes=vmem_limit_bytes,
        ),
        cost_estimate=cost,
    )(xp, avg, w1p, b1p, w2p, b2p)

    out2 = outp.reshape(n_pad, D_MODEL)[:N]
    return out2.reshape(B, S, D_MODEL)


def fully_connected_output(x, gamma, beta, w1, b1, w2, b2, *,
                           tm=2048, matmul_dtype=jnp.bfloat16):
    """Convenience wrapper (re-packs params every call; prefer pack_params + _packed)."""
    packed = pack_params(gamma, beta, w1, b1, w2, b2, matmul_dtype=matmul_dtype)
    return fully_connected_output_packed(x, packed, tm=tm)


def init_params(key):
    """Deterministic param init matching the PyTorch module's shapes.

    PyTorch Linear stores weight as [out, in]; we store transposed [in, out]
    so the kernel computes x @ W directly.
    """
    k1, k2, k3, k4 = jax.random.split(key, 4)
    bound1 = 1.0 / jnp.sqrt(D_MODEL)
    bound2 = 1.0 / jnp.sqrt(D_HIDDEN)
    w1 = jax.random.uniform(k1, (D_MODEL, D_HIDDEN), jnp.float32, -bound1, bound1)
    b1 = jax.random.uniform(k2, (D_HIDDEN,), jnp.float32, -bound1, bound1)
    w2 = jax.random.uniform(k3, (D_HIDDEN, D_MODEL), jnp.float32, -bound2, bound2)
    b2 = jax.random.uniform(k4, (D_MODEL,), jnp.float32, -bound2, bound2)
    gamma = jnp.ones((D_MODEL,), jnp.float32)   # LayerNorm weight init
    beta = jnp.zeros((D_MODEL,), jnp.float32)   # LayerNorm bias init
    return gamma, beta, w1, b1, w2, b2


def reference(x, gamma, beta, w1, b1, w2, b2):
    mean = jnp.mean(x, axis=-1, keepdims=True)
    var = jnp.mean((x - mean) ** 2, axis=-1, keepdims=True)
    xn = (x - mean) / jnp.sqrt(var + LN_EPS) * gamma + beta
    h = jnp.maximum(xn @ w1 + b1, 0.0)
    out = h @ w2 + b2
    return x + out


if __name__ == "__main__":
    key = jax.random.PRNGKey(0)
    kx, kp = jax.random.split(key)
    B, S = 2, 8
    x = jax.random.normal(kx, (B, S, D_MODEL), jnp.float32)
    gamma, beta, w1, b1, w2, b2 = init_params(kp)

    # Pack/fold params once (cached outside the per-call path), then run.
    packed = pack_params(gamma, beta, w1, b1, w2, b2, matmul_dtype=jnp.bfloat16)
    fn = jax.jit(functools.partial(fully_connected_output_packed, tm=2048))
    out = jax.block_until_ready(fn(x, packed))

    ref = reference(x, gamma, beta, w1, b1, w2, b2)
    assert out.shape == (B, S, D_MODEL)
    # bf16 MXU contractions (f32 accumulation, f32 LN stats + residual): looser
    # tolerance than the pure-f32 path.
    assert jnp.allclose(out, ref, atol=3e-2, rtol=3e-2), "mismatch vs reference"
    print("KERNEL_OK")
</pallas_src>

<mosaic_0001>
module attributes {stable_mosaic.version = 11 : i64} {
  func.func @fc_output_kernel(%arg0: i32, %arg1: memref<8x128xf32, #tpu.memory_space<vmem>>, %arg2: memref<128x128xf32, #tpu.memory_space<vmem>>, %arg3: memref<128x256xbf16, #tpu.memory_space<vmem>>, %arg4: memref<1x256xf32, #tpu.memory_space<vmem>>, %arg5: memref<256x128xbf16, #tpu.memory_space<vmem>>, %arg6: memref<1x128xf32, #tpu.memory_space<vmem>>, %arg7: memref<8x128xf32, #tpu.memory_space<vmem>>) attributes {dimension_semantics = [#tpu.dimension_semantics<parallel>], iteration_bounds = array<i64: 1>, scalar_prefetch = 0 : i64, scratch_operands = 0 : i64, tpu.core_type = #tpu.core_type<tc>, window_params = [{transform_indices = @transform_0, window_bounds = array<i64: 8, 128>}, {pipeline_mode = #tpu.pipeline_mode<synchronous>, transform_indices = @transform_1, window_bounds = array<i64: 128, 128>}, {pipeline_mode = #tpu.pipeline_mode<synchronous>, transform_indices = @transform_2, window_bounds = array<i64: 128, 256>}, {pipeline_mode = #tpu.pipeline_mode<synchronous>, transform_indices = @transform_3, window_bounds = array<i64: 1, 256>}, {pipeline_mode = #tpu.pipeline_mode<synchronous>, transform_indices = @transform_4, window_bounds = array<i64: 256, 128>}, {pipeline_mode = #tpu.pipeline_mode<synchronous>, transform_indices = @transform_5, window_bounds = array<i64: 1, 128>}, {transform_indices = @transform_6, window_bounds = array<i64: 8, 128>}]} {
    %c0 = arith.constant 0 : index
    %c0_0 = arith.constant 0 : index
    %0 = vector.load %arg1[%c0, %c0_0] : memref<8x128xf32, #tpu.memory_space<vmem>>, vector<8x128xf32>
    %c0_1 = arith.constant 0 : index
    %c0_2 = arith.constant 0 : index
    %1 = vector.load %arg2[%c0_1, %c0_2] : memref<128x128xf32, #tpu.memory_space<vmem>>, vector<128x128xf32>
    %cst = arith.constant dense<0.000000e+00> : vector<8x128xf32>
    %2 = tpu.matmul %0, %1, %cst {dimension_numbers = #tpu.dot_dimension_numbers<[1], [0], [0], [1], [0, 0, 1, 1], [], []>} : vector<8x128xf32>, vector<128x128xf32>, vector<8x128xf32> -> vector<8x128xf32>
    %3 = arith.mulf %0, %0 : vector<8x128xf32>
    %cst_3 = arith.constant dense<0.000000e+00> : vector<8x128xf32>
    %4 = tpu.matmul %3, %1, %cst_3 {dimension_numbers = #tpu.dot_dimension_numbers<[1], [0], [0], [1], [0, 0, 1, 1], [], []>} : vector<8x128xf32>, vector<128x128xf32>, vector<8x128xf32> -> vector<8x128xf32>
    %5 = arith.mulf %2, %2 : vector<8x128xf32>
    %6 = arith.subf %4, %5 : vector<8x128xf32>
    %7 = arith.subf %0, %2 : vector<8x128xf32>
    %cst_4 = arith.constant 9.99999974E-6 : f32
    %8 = vector.broadcast %cst_4 : f32 to vector<8x128xf32>
    %9 = arith.addf %6, %8 : vector<8x128xf32>
    %10 = math.rsqrt %9 : vector<8x128xf32>
    %11 = arith.mulf %7, %10 : vector<8x128xf32>
    %12 = arith.truncf %11 : vector<8x128xf32> to vector<8x128xbf16>
    %c0_5 = arith.constant 0 : index
    %c0_6 = arith.constant 0 : index
    %13 = vector.load %arg3[%c0_5, %c0_6] : memref<128x256xbf16, #tpu.memory_space<vmem>>, vector<128x256xbf16>
    %cst_7 = arith.constant dense<0.000000e+00> : vector<8x256xf32>
    %14 = tpu.matmul %12, %13, %cst_7 {dimension_numbers = #tpu.dot_dimension_numbers<[1], [0], [0], [1], [0, 0, 1, 1], [], []>} : vector<8x128xbf16>, vector<128x256xbf16>, vector<8x256xf32> -> vector<8x256xf32>
    %c0_8 = arith.constant 0 : index
    %c0_9 = arith.constant 0 : index
    %15 = vector.load %arg4[%c0_8, %c0_9] : memref<1x256xf32, #tpu.memory_space<vmem>>, vector<1x256xf32>
    %16 = vector.broadcast %15 : vector<1x256xf32> to vector<8x256xf32>
    %17 = arith.addf %14, %16 : vector<8x256xf32>
    %cst_10 = arith.constant 0.000000e+00 : f32
    %18 = vector.broadcast %cst_10 : f32 to vector<8x256xf32>
    %19 = arith.maximumf %17, %18 : vector<8x256xf32>
    %20 = arith.truncf %19 : vector<8x256xf32> to vector<8x256xbf16>
    %c0_11 = arith.constant 0 : index
    %c0_12 = arith.constant 0 : index
    %21 = vector.load %arg5[%c0_11, %c0_12] : memref<256x128xbf16, #tpu.memory_space<vmem>>, vector<256x128xbf16>
    %cst_13 = arith.constant dense<0.000000e+00> : vector<8x128xf32>
    %22 = tpu.matmul %20, %21, %cst_13 {dimension_numbers = #tpu.dot_dimension_numbers<[1], [0], [0], [1], [0, 0, 1, 1], [], []>} : vector<8x256xbf16>, vector<256x128xbf16>, vector<8x128xf32> -> vector<8x128xf32>
    %c0_14 = arith.constant 0 : index
    %c0_15 = arith.constant 0 : index
    %23 = vector.load %arg6[%c0_14, %c0_15] : memref<1x128xf32, #tpu.memory_space<vmem>>, vector<1x128xf32>
    %24 = vector.broadcast %23 : vector<1x128xf32> to vector<8x128xf32>
    %25 = arith.addf %22, %24 : vector<8x128xf32>
    %26 = arith.addf %0, %25 : vector<8x128xf32>
    %c0_16 = arith.constant 0 : index
    %c0_17 = arith.constant 0 : index
    %27 = vector.load %arg7[%c0_16, %c0_17] : memref<8x128xf32, #tpu.memory_space<vmem>>, vector<8x128xf32>
    tpu.vector_store %arg7[%c0_16, %c0_17], %26 {strides = array<i32>} : memref<8x128xf32, #tpu.memory_space<vmem>>, vector<8x128xf32>,
    return
  }
  func.func @transform_0(%arg0: i32) -> (i32, i32) {
    %c0_i32 = arith.constant 0 : i32
    %c0_i32_0 = arith.constant 0 : i32
    return %arg0, %c0_i32 : i32, i32
  }
  func.func @transform_1(%arg0: i32) -> (i32, i32) {
    %c0_i32 = arith.constant 0 : i32
    %c0_i32_0 = arith.constant 0 : i32
    %c0_i32_1 = arith.constant 0 : i32
    return %c0_i32, %c0_i32_0 : i32, i32
  }
  func.func @transform_2(%arg0: i32) -> (i32, i32) {
    %c0_i32 = arith.constant 0 : i32
    %c0_i32_0 = arith.constant 0 : i32
    %c0_i32_1 = arith.constant 0 : i32
    return %c0_i32, %c0_i32_0 : i32, i32
  }
  func.func @transform_3(%arg0: i32) -> (i32, i32) {
    %c0_i32 = arith.constant 0 : i32
    %c0_i32_0 = arith.constant 0 : i32
    %c0_i32_1 = arith.constant 0 : i32
    return %c0_i32, %c0_i32_0 : i32, i32
  }
  func.func @transform_4(%arg0: i32) -> (i32, i32) {
    %c0_i32 = arith.constant 0 : i32
    %c0_i32_0 = arith.constant 0 : i32
    %c0_i32_1 = arith.constant 0 : i32
    return %c0_i32, %c0_i32_0 : i32, i32
  }
  func.func @transform_5(%arg0: i32) -> (i32, i32) {
    %c0_i32 = arith.constant 0 : i32
    %c0_i32_0 = arith.constant 0 : i32
    %c0_i32_1 = arith.constant 0 : i32
    return %c0_i32, %c0_i32_0 : i32, i32
  }
  func.func @transform_6(%arg0: i32) -> (i32, i32) {
    %c0_i32 = arith.constant 0 : i32
    %c0_i32_0 = arith.constant 0 : i32
    return %arg0, %c0_i32 : i32, i32
  }
}

</mosaic_0001>

<llo_original>
// kernel: fully_connected_output_packed.1
$region0: #{fully_connected_output_packed.1}
  #allocation0 [shape = 'u32[]', space=smem, size = 0x4, offset = 0x4, fixed_abs, tag = 'smem constant byte address 0x4 - core index']
  #allocation1 [shape = 'u32[144,128]{1,0:T(1,128)}', space=vmem, size = 0x12000, scoped, tag = 'internal scratch']
  %s0 = inlined_call_operand.vmem [shape: f32[8,128], index: 0, kind: input, shape index: {}]
  %s1 = inlined_call_operand.hbm [shape: f32[128,128], index: 1, kind: input, shape index: {}]
  %s2 = inlined_call_operand.hbm [shape: bf16[128,256], index: 2, kind: input, shape index: {}]
  %s3 = inlined_call_operand.vmem [shape: f32[1,256], index: 3, kind: input, shape index: {}]
  %s4 = inlined_call_operand.hbm [shape: bf16[256,128], index: 4, kind: input, shape index: {}]
  %s5 = inlined_call_operand.vmem [shape: f32[1,128], index: 5, kind: input, shape index: {}]
  %s6 = inlined_call_operand.vmem [shape: f32[8,128], index: 6, kind: output, shape index: {}]
  %s7 = sld [smem:[#allocation0]]
  $region46: #{fully_connected_output_packed.1} parent=0
    _
  %s9 = ssub.s32 1, %s7
  %s10 = scalar_select 0, %s9, %s7
  $region1: #{fully_connected_output_packed.1} parent=0
    #allocation2 [shape = 'u8[65536]{0}', space=vmem, size = 0x10000, scoped, tag = 'input window, operand 1, single buffered']
    #allocation3 [shape = 's32[1]{0}', space=sflag, size = 0x4, scoped, tag = 'scoped memory for fully_connected_output_packed.1']
    #allocation4 [shape = 'u8[65536]{0}', space=vmem, size = 0x10000, scoped, tag = 'input window, operand 2, single buffered']
    #allocation5 [shape = 's32[1]{0}', space=sflag, size = 0x4, scoped, tag = 'scoped memory for fully_connected_output_packed.1']
    #allocation6 [shape = 'u8[65536]{0}', space=vmem, size = 0x10000, scoped, tag = 'input window, operand 4, single buffered']
    %11 = vsyncpa [#allocation3], 0
    %12 = vsyncpa [#allocation5], 0
    // Predicated region
    $region2: #{fully_connected_output_packed.1} parent=1 // pred_check
      _
    $region3: #{fully_connected_output_packed.1} parent=1 // pred_check_branch
      %14 = sbr.rel (0) target = $region5
    $region4: #{fully_connected_output_packed.1} parent=1 // pred_region
      _
    $region5: #{fully_connected_output_packed.1} parent=1 // pred_fallthru
      _
    // Predicated region
    $region6: #{fully_connected_output_packed.1} parent=1 // pred_check
      _
    $region7: #{fully_connected_output_packed.1} parent=1 // pred_check_branch
      %16 = sbr.rel (0) target = $region9
    $region8: #{fully_connected_output_packed.1} parent=1 // pred_region
      %s18 = ssub.s32 2048, 2048
      %19 = vsyncadd [#allocation3], %s18
      %s20 = sshll.u32 [#allocation2], 4
      %s21 = int_to_ptr.vmem [resolvable:$true] %s20
      %26 = dma.hbm_to_vmem [thread:$0]  %s1, 2048, %s21, [#allocation3], 128, 128, 8
    $region9: #{fully_connected_output_packed.1} parent=1 // pred_fallthru
      _
    // Predicated region
    $region10: #{fully_connected_output_packed.1} parent=1 // pred_check
      _
    $region11: #{fully_connected_output_packed.1} parent=1 // pred_check_branch
      %28 = sbr.rel (0) target = $region13
    $region12: #{fully_connected_output_packed.1} parent=1 // pred_region
      %s30 = ssub.s32 2048, 2048
      %31 = vsyncadd [#allocation5], %s30
      %s32 = sshll.u32 [#allocation4], 4
      %s33 = int_to_ptr.vmem [resolvable:$true] %s32
      %38 = dma.hbm_to_vmem [thread:$0]  %s2, 2048, %s33, [#allocation5], 128, 128, 8
    $region13: #{fully_connected_output_packed.1} parent=1 // pred_fallthru
      _
    // Predicated region
    $region14: #{fully_connected_output_packed.1} parent=1 // pred_check
      _
    $region15: #{fully_connected_output_packed.1} parent=1 // pred_check_branch
      %40 = sbr.rel (0) target = $region17
    $region16: #{fully_connected_output_packed.1} parent=1 // pred_region
      _
    $region17: #{fully_connected_output_packed.1} parent=1 // pred_fallthru
      _
    // Predicated region
    $region18: #{fully_connected_output_packed.1} parent=1 // pred_check
      _
    $region19: #{fully_connected_output_packed.1} parent=1 // pred_check_branch
      %42 = sbr.rel (0) target = $region21
    $region20: #{fully_connected_output_packed.1} parent=1 // pred_region
      %s44 = ssub.s32 2048, 2048
      %45 = vsyncadd [#allocation5], %s44
      %s46 = sshll.u32 [#allocation6], 4
      %s47 = int_to_ptr.vmem [resolvable:$true] %s46
      %52 = dma.hbm_to_vmem [thread:$0]  %s4, 2048, %s47, [#allocation5], 64, 64, 4
    $region21: #{fully_connected_output_packed.1} parent=1 // pred_fallthru
      _
    // Predicated region
    $region22: #{fully_connected_output_packed.1} parent=1 // pred_check
      _
    $region23: #{fully_connected_output_packed.1} parent=1 // pred_check_branch
      %54 = sbr.rel (0) target = $region25
    $region24: #{fully_connected_output_packed.1} parent=1 // pred_region
      _
    $region25: #{fully_connected_output_packed.1} parent=1 // pred_fallthru
      _
    // Predicated region
    $region26: #{fully_connected_output_packed.1} parent=1 // pred_check
      _
    $region27: #{fully_connected_output_packed.1} parent=1 // pred_check_branch
      %56 = sbr.rel (0) target = $region29
    $region28: #{fully_connected_output_packed.1} parent=1 // pred_region
      %57 = dma.done [#allocation3], 2048
    $region29: #{fully_connected_output_packed.1} parent=1 // pred_fallthru
      _
    // Predicated region
    $region30: #{fully_connected_output_packed.1} parent=1 // pred_check
      _
    $region31: #{fully_connected_output_packed.1} parent=1 // pred_check_branch
      %59 = sbr.rel (0) target = $region33
    $region32: #{fully_connected_output_packed.1} parent=1 // pred_region
      %60 = dma.done [#allocation5], 2048
    $region33: #{fully_connected_output_packed.1} parent=1 // pred_fallthru
      _
    // Predicated region
    $region34: #{fully_connected_output_packed.1} parent=1 // pred_check
      _
    $region35: #{fully_connected_output_packed.1} parent=1 // pred_check_branch
      %62 = sbr.rel (0) target = $region37
    $region36: #{fully_connected_output_packed.1} parent=1 // pred_region
      %63 = dma.done [#allocation5], 2048
    $region37: #{fully_connected_output_packed.1} parent=1 // pred_fallthru
      _
    %v65 = vld [vmem:[%s0] sm:$0xff]
    %v66 = vld [vmem:[#allocation2] sm:$0xff]
    %v67 = vld [vmem:[#allocation2 + $0x8] sm:$0xff]
    %v68 = vld [vmem:[#allocation2 + $0x10] sm:$0xff]
    %v69 = vld [vmem:[#allocation2 + $0x18] sm:$0xff]
    %v70 = vld [vmem:[#allocation2 + $0x20] sm:$0xff]
    %v71 = vld [vmem:[#allocation2 + $0x28] sm:$0xff]
    %v72 = vld [vmem:[#allocation2 + $0x30] sm:$0xff]
    %v73 = vld [vmem:[#allocation2 + $0x38] sm:$0xff]
    %v74 = vld [vmem:[#allocation2 + $0x40] sm:$0xff]
    %v75 = vld [vmem:[#allocation2 + $0x48] sm:$0xff]
    %v76 = vld [vmem:[#allocation2 + $0x50] sm:$0xff]
    %v77 = vld [vmem:[#allocation2 + $0x58] sm:$0xff]
    %v78 = vld [vmem:[#allocation2 + $0x60] sm:$0xff]
    %v79 = vld [vmem:[#allocation2 + $0x68] sm:$0xff]
    %v80 = vld [vmem:[#allocation2 + $0x70] sm:$0xff]
    %v81 = vld [vmem:[#allocation2 + $0x78] sm:$0xff]
    %82 = vmatprep.subr.mxu0 0.0
    %83 = vmatpush1.msra.mxu0 %v66
    %84 = vmatprep.subr.mxu0 0.0
    %85 = vmatpush1.msra.mxu0 %v67
    %86 = vmatprep.subr.mxu0 0.0
    %87 = vmatpush1.msra.mxu0 %v68
    %88 = vmatprep.subr.mxu0 0.0
    %89 = vmatpush1.msra.mxu0 %v69
    %90 = vmatprep.subr.mxu0 0.0
    %91 = vmatpush1.msra.mxu0 %v70
    %92 = vmatprep.subr.mxu0 0.0
    %93 = vmatpush1.msra.mxu0 %v71
    %94 = vmatprep.subr.mxu0 0.0
    %95 = vmatpush1.msra.mxu0 %v72
    %96 = vmatprep.subr.mxu0 0.0
    %97 = vmatpush1.msra.mxu0 %v73
    %98 = vmatprep.subr.mxu0 0.0
    %99 = vmatpush1.msra.mxu0 %v74
    %100 = vmatprep.subr.mxu0 0.0
    %101 = vmatpush1.msra.mxu0 %v75
    %102 = vmatprep.subr.mxu0 0.0
    %103 = vmatpush1.msra.mxu0 %v76
    %104 = vmatprep.subr.mxu0 0.0
    %105 = vmatpush1.msra.mxu0 %v77
    %106 = vmatprep.subr.mxu0 0.0
    %107 = vmatpush1.msra.mxu0 %v78
    %108 = vmatprep.subr.mxu0 0.0
    %109 = vmatpush1.msra.mxu0 %v79
    %110 = vmatprep.subr.mxu0 0.0
    %111 = vmatpush1.msra.mxu0 %v80
    %112 = vmatprep.subr.mxu0 0.0
    %113 = vmatpush1.msra.mxu0 %v81
    %114 = vmatprep.subr.mxu0 0.0
    %115 = vmatpush1.msra.mxu0 0.0
    %116 = vmatprep.subr.mxu0 0.0
    %117 = vmatpush1.msra.mxu0 0.0
    %118 = vmatprep.subr.mxu0 0.0
    %119 = vmatpush1.msra.mxu0 0.0
    %120 = vmatprep.subr.mxu0 0.0
    %121 = vmatpush1.msra.mxu0 0.0
    %122 = vmatprep.subr.mxu0 0.0
    %123 = vmatpush1.msra.mxu0 0.0
    %124 = vmatprep.subr.mxu0 0.0
    %125 = vmatpush1.msra.mxu0 0.0
    %126 = vmatprep.subr.mxu0 0.0
    %127 = vmatpush1.msra.mxu0 0.0
    %128 = vmatprep.subr.mxu0 0.0
    %129 = vmatpush1.msra.mxu0 0.0
    %130 = vmatprep.subr.mxu0 0.0
    %131 = vmatpush1.msra.mxu0 0.0
    %132 = vmatprep.subr.mxu0 0.0
    %133 = vmatpush1.msra.mxu0 0.0
    %134 = vmatprep.subr.mxu0 0.0
    %135 = vmatpush1.msra.mxu0 0.0
    %136 = vmatprep.subr.mxu0 0.0
    %137 = vmatpush1.msra.mxu0 0.0
    %138 = vmatprep.subr.mxu0 0.0
    %139 = vmatpush1.msra.mxu0 0.0
    %140 = vmatprep.subr.mxu0 0.0
    %141 = vmatpush1.msra.mxu0 0.0
    %142 = vmatprep.subr.mxu0 0.0
    %143 = vmatpush1.msra.mxu0 0.0
    %144 = vmatprep.subr.mxu0 0.0
    %145 = vmatpush1.msra.mxu0 0.0
    %146 = vmatprep.mubr.f32.mxu0 0.0
    %147 = vmatmul.mubr.f32.gmra.mrb[0].mxu0 %v65
    %v148 = vpop.f32.mrb[0].mxu0
    %v149 = vadd.f32 0.0, %v148
    %v150 = vpop.f32.mrb[0].mxu0
    %151 = vdwg.mxu0
    %v152 = vmul.f32 %v65, %v65
    %153 = vmatprep.subr.mxu0 0.0
    %154 = vmatpush1.msra.mxu0 %v66
    %155 = vmatprep.subr.mxu0 0.0
    %156 = vmatpush1.msra.mxu0 %v67
    %157 = vmatprep.subr.mxu0 0.0
    %158 = vmatpush1.msra.mxu0 %v68
    %159 = vmatprep.subr.mxu0 0.0
    %160 = vmatpush1.msra.mxu0 %v69
    %161 = vmatprep.subr.mxu0 0.0
    %162 = vmatpush1.msra.mxu0 %v70
    %163 = vmatprep.subr.mxu0 0.0
    %164 = vmatpush1.msra.mxu0 %v71
    %165 = vmatprep.subr.mxu0 0.0
    %166 = vmatpush1.msra.mxu0 %v72
    %167 = vmatprep.subr.mxu0 0.0
    %168 = vmatpush1.msra.mxu0 %v73
    %169 = vmatprep.subr.mxu0 0.0
    %170 = vmatpush1.msra.mxu0 %v74
    %171 = vmatprep.subr.mxu0 0.0
    %172 = vmatpush1.msra.mxu0 %v75
    %173 = vmatprep.subr.mxu0 0.0
    %174 = vmatpush1.msra.mxu0 %v76
    %175 = vmatprep.subr.mxu0 0.0
    %176 = vmatpush1.msra.mxu0 %v77
    %177 = vmatprep.subr.mxu0 0.0
    %178 = vmatpush1.msra.mxu0 %v78
    %179 = vmatprep.subr.mxu0 0.0
    %180 = vmatpush1.msra.mxu0 %v79
    %181 = vmatprep.subr.mxu0 0.0
    %182 = vmatpush1.msra.mxu0 %v80
    %183 = vmatprep.subr.mxu0 0.0
    %184 = vmatpush1.msra.mxu0 %v81
    %185 = vmatprep.subr.mxu0 0.0
    %186 = vmatpush1.msra.mxu0 0.0
    %187 = vmatprep.subr.mxu0 0.0
    %188 = vmatpush1.msra.mxu0 0.0
    %189 = vmatprep.subr.mxu0 0.0
    %190 = vmatpush1.msra.mxu0 0.0
    %191 = vmatprep.subr.mxu0 0.0
    %192 = vmatpush1.msra.mxu0 0.0
    %193 = vmatprep.subr.mxu0 0.0
    %194 = vmatpush1.msra.mxu0 0.0
    %195 = vmatprep.subr.mxu0 0.0
    %196 = vmatpush1.msra.mxu0 0.0
    %197 = vmatprep.subr.mxu0 0.0
    %198 = vmatpush1.msra.mxu0 0.0
    %199 = vmatprep.subr.mxu0 0.0
    %200 = vmatpush1.msra.mxu0 0.0
    %201 = vmatprep.subr.mxu0 0.0
    %202 = vmatpush1.msra.mxu0 0.0
    %203 = vmatprep.subr.mxu0 0.0
    %204 = vmatpush1.msra.mxu0 0.0
    %205 = vmatprep.subr.mxu0 0.0
    %206 = vmatpush1.msra.mxu0 0.0
    %207 = vmatprep.subr.mxu0 0.0
    %208 = vmatpush1.msra.mxu0 0.0
    %209 = vmatprep.subr.mxu0 0.0
    %210 = vmatpush1.msra.mxu0 0.0
    %211 = vmatprep.subr.mxu0 0.0
    %212 = vmatpush1.msra.mxu0 0.0
    %213 = vmatprep.subr.mxu0 0.0
    %214 = vmatpush1.msra.mxu0 0.0
    %215 = vmatprep.subr.mxu0 0.0
    %216 = vmatpush1.msra.mxu0 0.0
    %217 = vmatprep.mubr.f32.mxu0 0.0
    %218 = vmatmul.mubr.f32.gmra.mrb[0].mxu0 %v152
    %v219 = vpop.f32.mrb[0].mxu0
    %v220 = vadd.f32 0.0, %v219
    %v221 = vpop.f32.mrb[0].mxu0
    %222 = vdwg.mxu0
    %v223 = vmul.f32 %v149, %v149
    %v224 = vsub.f32 %v220, %v223
    %v225 = vsub.f32 %v65, %v149
    %v226 = vadd.f32 %v224, 1e-05
    %v227 = vrsqrt.pop %v226
    %v228 = vmul.f32 %v225, %v227
    %v229 = vpack.c.bf16 %v228, %v228
    %v230 = vld [vmem:[#allocation4] sm:$0xff]
    %v231 = vld [vmem:[#allocation4 + $0x8] sm:$0xff]
    %v232 = vld [vmem:[#allocation4 + $0x10] sm:$0xff]
    %v233 = vld [vmem:[#allocation4 + $0x18] sm:$0xff]
    %v234 = vld [vmem:[#allocation4 + $0x20] sm:$0xff]
    %v235 = vld [vmem:[#allocation4 + $0x28] sm:$0xff]
    %v236 = vld [vmem:[#allocation4 + $0x30] sm:$0xff]
    %v237 = vld [vmem:[#allocation4 + $0x38] sm:$0xff]
    %v238 = vld [vmem:[#allocation4 + $0x40] sm:$0xff]
    %v239 = vld [vmem:[#allocation4 + $0x48] sm:$0xff]
    %v240 = vld [vmem:[#allocation4 + $0x50] sm:$0xff]
    %v241 = vld [vmem:[#allocation4 + $0x58] sm:$0xff]
    %v242 = vld [vmem:[#allocation4 + $0x60] sm:$0xff]
    %v243 = vld [vmem:[#allocation4 + $0x68] sm:$0xff]
    %v244 = vld [vmem:[#allocation4 + $0x70] sm:$0xff]
    %v245 = vld [vmem:[#allocation4 + $0x78] sm:$0xff]
    %v246 = vld [vmem:[%s3] sm:$0x3]
    %v248 = vlaneseq
    %v249 = vshrl.u32 %v248, 7
    %v250 = vsub.s32 0, %v249
    %v251 = vrot.slane %v246, %v250
    %v252 = vlaneseq
    %v253 = vshrl.u32 %v252, 7
    %v254 = vsub.s32 1, %v253
    %v255 = vrot.slane %v246, %v254
    %v274 = vunpack.c.l.b16 %v230
    %v275 = vunpack.c.h.b16 %v230
    %v276 = vunpack.c.l.b16 %v231
    %v277 = vunpack.c.h.b16 %v231
    %v278 = vunpack.c.l.b16 %v232
    %v279 = vunpack.c.h.b16 %v232
    %v280 = vunpack.c.l.b16 %v233
    %v281 = vunpack.c.h.b16 %v233
    %v282 = vunpack.c.l.b16 %v234
    %v283 = vunpack.c.h.b16 %v234
    %v284 = vunpack.c.l.b16 %v235
    %v285 = vunpack.c.h.b16 %v235
    %v286 = vunpack.c.l.b16 %v236
    %v287 = vunpack.c.h.b16 %v236
    %v288 = vunpack.c.l.b16 %v237
    %v289 = vunpack.c.h.b16 %v237
    %v290 = vunpack.c.l.b16 %v238
    %v291 = vunpack.c.h.b16 %v238
    %v292 = vunpack.c.l.b16 %v239
    %v293 = vunpack.c.h.b16 %v239
    %v294 = vunpack.c.l.b16 %v240
    %v295 = vunpack.c.h.b16 %v240
    %v296 = vunpack.c.l.b16 %v241
    %v297 = vunpack.c.h.b16 %v241
    %v298 = vunpack.c.l.b16 %v242
    %v299 = vunpack.c.h.b16 %v242
    %v300 = vunpack.c.l.b16 %v243
    %v301 = vunpack.c.h.b16 %v243
    %v302 = vunpack.c.l.b16 %v244
    %v303 = vunpack.c.h.b16 %v244
    %v304 = vunpack.c.l.b16 %v245
    %v305 = vunpack.c.h.b16 %v245
    %v306 = vpack.c.b16 %v276, %v274
    %v307 = vpack.c.b16 %v277, %v275
    %v308 = vpack.c.b16 %v280, %v278
    %v309 = vpack.c.b16 %v281, %v279
    %v310 = vpack.c.b16 %v284, %v282
    %v311 = vpack.c.b16 %v285, %v283
    %v312 = vpack.c.b16 %v288, %v286
    %v313 = vpack.c.b16 %v289, %v287
    %v314 = vpack.c.b16 %v292, %v290
    %v315 = vpack.c.b16 %v293, %v291
    %v316 = vpack.c.b16 %v296, %v294
    %v317 = vpack.c.b16 %v297, %v295
    %v318 = vpack.c.b16 %v300, %v298
    %v319 = vpack.c.b16 %v301, %v299
    %v320 = vpack.c.b16 %v304, %v302
    %v321 = vpack.c.b16 %v305, %v303
    %338 = vmatprep.subr.bf16.mxu0 %v307
    %339 = vmatpush1.bf16.msra.mxu0 %v306
    %340 = vmatprep.subr.bf16.mxu0 %v309
    %341 = vmatpush1.bf16.msra.mxu0 %v308
    %342 = vmatprep.subr.bf16.mxu0 %v311
    %343 = vmatpush1.bf16.msra.mxu0 %v310
    %344 = vmatprep.subr.bf16.mxu0 %v313
    %345 = vmatpush1.bf16.msra.mxu0 %v312
    %346 = vmatprep.subr.bf16.mxu0 %v315
    %347 = vmatpush1.bf16.msra.mxu0 %v314
    %348 = vmatprep.subr.bf16.mxu0 %v317
    %349 = vmatpush1.bf16.msra.mxu0 %v316
    %350 = vmatprep.subr.bf16.mxu0 %v319
    %351 = vmatpush1.bf16.msra.mxu0 %v318
    %352 = vmatprep.subr.bf16.mxu0 %v321
    %353 = vmatpush1.bf16.msra.mxu0 %v320
    %354 = vmatprep.subr.bf16.mxu0 0
    %355 = vmatpush1.bf16.msra.mxu0 0
    %356 = vmatprep.subr.bf16.mxu0 0
    %357 = vmatpush1.bf16.msra.mxu0 0
    %358 = vmatprep.subr.bf16.mxu0 0
    %359 = vmatpush1.bf16.msra.mxu0 0
    %360 = vmatprep.subr.bf16.mxu0 0
    %361 = vmatpush1.bf16.msra.mxu0 0
    %362 = vmatprep.subr.bf16.mxu0 0
    %363 = vmatpush1.bf16.msra.mxu0 0
    %364 = vmatprep.subr.bf16.mxu0 0
    %365 = vmatpush1.bf16.msra.mxu0 0
    %366 = vmatprep.subr.bf16.mxu0 0
    %367 = vmatpush1.bf16.msra.mxu0 0
    %368 = vmatprep.subr.bf16.mxu0 0
    %369 = vmatpush1.bf16.msra.mxu0 0
    %370 = vmatprep.mubr.bf16.mxu0 0
    %371 = vmatmul.mubr.bf16.gmra.mrb[0].mxu0 %v229
    %v372 = vpop.f32.mrb[0].mxu0
    %v373 = vadd.f32 %v251, %v372
    %v374 = vpop.f32.mrb[0].mxu0
    %v375 = vadd.f32 %v255, %v374
    %v376 = vpop.f32.mrb[0].mxu0
    %v377 = vpop.f32.mrb[0].mxu0
    %378 = vdwg.mxu0
    %v379 = vmax.f32 %v373, 0.0
    %v380 = vmax.f32 %v375, 0.0
    %v381 = vpack.c.bf16 %v379, %v379
    %v382 = vpack.c.bf16 %v380, %v380
    %v383 = vld [vmem:[#allocation6] sm:$0xf]
    %v384 = vld [vmem:[#allocation6 + $0x4] sm:$0xf]
    %v385 = vld [vmem:[#allocation6 + $0x8] sm:$0xf]
    %v386 = vld [vmem:[#allocation6 + $0xc] sm:$0xf]
    %v387 = vld [vmem:[#allocation6 + $0x10] sm:$0xf]
    %v388 = vld [vmem:[#allocation6 + $0x14] sm:$0xf]
    %v389 = vld [vmem:[#allocation6 + $0x18] sm:$0xf]
    %v390 = vld [vmem:[#allocation6 + $0x1c] sm:$0xf]
    %v391 = vld [vmem:[#allocation6 + $0x20] sm:$0xf]
    %v392 = vld [vmem:[#allocation6 + $0x24] sm:$0xf]
    %v393 = vld [vmem:[#allocation6 + $0x28] sm:$0xf]
    %v394 = vld [vmem:[#allocation6 + $0x2c] sm:$0xf]
    %v395 = vld [vmem:[#allocation6 + $0x30] sm:$0xf]
    %v396 = vld [vmem:[#allocation6 + $0x34] sm:$0xf]
    %v397 = vld [vmem:[#allocation6 + $0x38] sm:$0xf]
    %v398 = vld [vmem:[#allocation6 + $0x3c] sm:$0xf]
    %v399 = vld [vmem:[#allocation6 + $0x40] sm:$0xf]
    %v400 = vld [vmem:[#allocation6 + $0x44] sm:$0xf]
    %v401 = vld [vmem:[#allocation6 + $0x48] sm:$0xf]
    %v402 = vld [vmem:[#allocation6 + $0x4c] sm:$0xf]
    %v403 = vld [vmem:[#allocation6 + $0x50] sm:$0xf]
    %v404 = vld [vmem:[#allocation6 + $0x54] sm:$0xf]
    %v405 = vld [vmem:[#allocation6 + $0x58] sm:$0xf]
    %v406 = vld [vmem:[#allocation6 + $0x5c] sm:$0xf]
    %v407 = vld [vmem:[#allocation6 + $0x60] sm:$0xf]
    %v408 = vld [vmem:[#allocation6 + $0x64] sm:$0xf]
    %v409 = vld [vmem:[#allocation6 + $0x68] sm:$0xf]
    %v410 = vld [vmem:[#allocation6 + $0x6c] sm:$0xf]
    %v411 = vld [vmem:[#allocation6 + $0x70] sm:$0xf]
    %v412 = vld [vmem:[#allocation6 + $0x74] sm:$0xf]
    %v413 = vld [vmem:[#allocation6 + $0x78] sm:$0xf]
    %v414 = vld [vmem:[#allocation6 + $0x7c] sm:$0xf]
    %v415 = vld [vmem:[%s5] sm:$0x1]
    %v417 = vlaneseq
    %v418 = vshrl.u32 %v417, 7
    %v419 = vsub.s32 0, %v418
    %v420 = vrot.slane %v415, %v419
    %v454 = vunpack.c.l.b16 %v383
    %v455 = vunpack.c.l.b16 %v384
    %v456 = vunpack.c.l.b16 %v385
    %v457 = vunpack.c.l.b16 %v386
    %v458 = vunpack.c.l.b16 %v387
    %v459 = vunpack.c.l.b16 %v388
    %v460 = vunpack.c.l.b16 %v389
    %v461 = vunpack.c.l.b16 %v390
    %v462 = vunpack.c.l.b16 %v391
    %v463 = vunpack.c.l.b16 %v392
    %v464 = vunpack.c.l.b16 %v393
    %v465 = vunpack.c.l.b16 %v394
    %v466 = vunpack.c.l.b16 %v395
    %v467 = vunpack.c.l.b16 %v396
    %v468 = vunpack.c.l.b16 %v397
    %v469 = vunpack.c.l.b16 %v398
    %v470 = vunpack.c.l.b16 %v399
    %v471 = vunpack.c.l.b16 %v400
    %v472 = vunpack.c.l.b16 %v401
    %v473 = vunpack.c.l.b16 %v402
    %v474 = vunpack.c.l.b16 %v403
    %v475 = vunpack.c.l.b16 %v404
    %v476 = vunpack.c.l.b16 %v405
    %v477 = vunpack.c.l.b16 %v406
    %v478 = vunpack.c.l.b16 %v407
    %v479 = vunpack.c.l.b16 %v408
    %v480 = vunpack.c.l.b16 %v409
    %v481 = vunpack.c.l.b16 %v410
    %v482 = vunpack.c.l.b16 %v411
    %v483 = vunpack.c.l.b16 %v412
    %v484 = vunpack.c.l.b16 %v413
    %v485 = vunpack.c.l.b16 %v414
    %v486 = vpack.c.b16 %v455, %v454
    %v487 = vpack.c.b16 %v457, %v456
    %v488 = vpack.c.b16 %v459, %v458
    %v489 = vpack.c.b16 %v461, %v460
    %v490 = vpack.c.b16 %v463, %v462
    %v491 = vpack.c.b16 %v465, %v464
    %v492 = vpack.c.b16 %v467, %v466
    %v493 = vpack.c.b16 %v469, %v468
    %v494 = vpack.c.b16 %v471, %v470
    %v495 = vpack.c.b16 %v473, %v472
    %v496 = vpack.c.b16 %v475, %v474
    %v497 = vpack.c.b16 %v477, %v476
    %v498 = vpack.c.b16 %v479, %v478
    %v499 = vpack.c.b16 %v481, %v480
    %v500 = vpack.c.b16 %v483, %v482
    %v501 = vpack.c.b16 %v485, %v484
    %518 = vmatprep.subr.bf16.mxu0 0
    %519 = vmatpush1.bf16.msra.mxu0 %v486
    %520 = vmatprep.subr.bf16.mxu0 0
    %521 = vmatpush1.bf16.msra.mxu0 %v487
    %522 = vmatprep.subr.bf16.mxu0 0
    %523 = vmatpush1.bf16.msra.mxu0 %v488
    %524 = vmatprep.subr.bf16.mxu0 0
    %525 = vmatpush1.bf16.msra.mxu0 %v489
    %526 = vmatprep.subr.bf16.mxu0 0
    %527 = vmatpush1.bf16.msra.mxu0 %v490
    %528 = vmatprep.subr.bf16.mxu0 0
    %529 = vmatpush1.bf16.msra.mxu0 %v491
    %530 = vmatprep.subr.bf16.mxu0 0
    %531 = vmatpush1.bf16.msra.mxu0 %v492
    %532 = vmatprep.subr.bf16.mxu0 0
    %533 = vmatpush1.bf16.msra.mxu0 %v493
    %534 = vmatprep.subr.bf16.mxu0 0
    %535 = vmatpush1.bf16.msra.mxu0 %v494
    %536 = vmatprep.subr.bf16.mxu0 0
    %537 = vmatpush1.bf16.msra.mxu0 %v495
    %538 = vmatprep.subr.bf16.mxu0 0
    %539 = vmatpush1.bf16.msra.mxu0 %v496
    %540 = vmatprep.subr.bf16.mxu0 0
    %541 = vmatpush1.bf16.msra.mxu0 %v497
    %542 = vmatprep.subr.bf16.mxu0 0
    %543 = vmatpush1.bf16.msra.mxu0 %v498
    %544 = vmatprep.subr.bf16.mxu0 0
    %545 = vmatpush1.bf16.msra.mxu0 %v499
    %546 = vmatprep.subr.bf16.mxu0 0
    %547 = vmatpush1.bf16.msra.mxu0 %v500
    %548 = vmatprep.subr.bf16.mxu0 0
    %549 = vmatpush1.bf16.msra.mxu0 %v501
    %550 = vmatprep.mubr.bf16.mxu0 %v382
    %551 = vmatmul.mubr.bf16.gmra.mrb[0].mxu0 %v381
    %v552 = vpop.f32.mrb[0].mxu0
    %v553 = vadd.f32 %v420, %v552
    %v554 = vpop.f32.mrb[0].mxu0
    %v555 = vpop.f32.mrb[0].mxu0
    %v556 = vpop.f32.mrb[0].mxu0
    %557 = vdwg.mxu0
    %v558 = vadd.f32 %v65, %v553
    %559 = vst [vmem:[%s6] sm:$0xff] %v558
    // Predicated region
    $region38: #{fully_connected_output_packed.1} parent=1 // pred_check
      _
    $region39: #{fully_connected_output_packed.1} parent=1 // pred_check_branch
      %561 = sbr.rel (0) target = $region41
    $region40: #{fully_connected_output_packed.1} parent=1 // pred_region
      _
    $region41: #{fully_connected_output_packed.1} parent=1 // pred_fallthru
      _
    // Predicated region
    $region42: #{fully_connected_output_packed.1} parent=1 // pred_check
      _
    $region43: #{fully_connected_output_packed.1} parent=1 // pred_check_branch
      %563 = sbr.rel (0) target = $region45
    $region44: #{fully_connected_output_packed.1} parent=1 // pred_region
      _
    $region45: #{fully_connected_output_packed.1} parent=1 // pred_fallthru
      _
    %564 = vsyncpa [#allocation3], 1
    %565 = vsyncpa [#allocation5], 1

</llo_original>
